<compile_context>
chip_gen: v7x
topology: tpu7x:2x2x1
jax: 0.10.0
libtpu: 0.0.40
codegen_flags: <defaults>
</compile_context>

<pallas_src>
import functools

import jax
import jax.numpy as jnp
from jax import lax
from jax.experimental import pallas as pl
from jax.experimental.pallas import tpu as pltpu

_MiB = 1024 * 1024


def _round_up(x, m):
    return ((x + m - 1) // m) * m


def _vmem_limit_bytes():
    """Scoped-VMEM limit safe per generation.

    v5e/v6e: 128 MiB physical (16/32 MiB scoped default); v7x: 64 MiB physical
    (32 MiB scoped default).  Raise to ~75% of physical, keep headroom for Mosaic
    internal scratch.
    """
    cap = 64 * _MiB  # conservative default: v7x physical VMEM
    try:
        cap = int(pltpu.get_tpu_info().vmem_capacity_bytes)
    except Exception:
        pass
    return max(32 * _MiB, min((3 * cap) // 4, cap - 16 * _MiB))


# --------------------------------------------------------------------------------------
# Fast path: VMEM-resident table, one-hot MXU gather.
# --------------------------------------------------------------------------------------
def _vmem_onehot_kernel(ids_ref, table_ref, out_ref, *, v_chunk):
    """ids_ref: (tm, 1) int32 VMEM; table_ref: (V, D) VMEM (resident); out_ref: (tm, D)."""
    tm, _ = out_ref.shape
    V = table_ref.shape[0]
    ids = ids_ref[...]  # (tm, 1) int32

    acc = None
    # Static chunking over the vocab keeps the (tm, v_chunk) one-hot bounded in VMEM.
    for v0 in range(0, V, v_chunk):
        vc = min(v_chunk, V - v0)
        cols = v0 + lax.broadcasted_iota(jnp.int32, (tm, vc), 1)
        onehot = (ids == cols).astype(table_ref.dtype)  # exactly one 1.0 per row overall
        part = jnp.dot(onehot, table_ref[pl.ds(v0, vc), :],
                       preferred_element_type=jnp.float32)
        acc = part if acc is None else acc + part

    out_ref[...] = acc.astype(out_ref.dtype)


# --------------------------------------------------------------------------------------
# Fallback: table stays in HBM, per-row gather DMAs, single aggregate wait per tile.
# --------------------------------------------------------------------------------------
def _hbm_row_gather_kernel(ids_ref, table_hbm, out_ref, copy_sem):
    """ids_ref: (T_pad,) int32 SMEM (scalar prefetch); table_hbm: (V, D) HBM;
    out_ref: (tm, D) VMEM output tile; copy_sem: shared DMA semaphore."""
    tm = out_ref.shape[0]
    base = pl.program_id(0) * tm

    # Issue one row-gather DMA per token; unrolled so SMEM scalar reads and
    # descriptor issues co-issue instead of paying per-iteration loop overhead.
    @pl.loop(0, tm, unroll=True)
    def _issue(t):
        tok = ids_ref[base + t]
        pltpu.make_async_copy(
            table_hbm.at[pl.ds(tok, 1), :],
            out_ref.at[pl.ds(t, 1), :],
            copy_sem,
        ).start()

    # One aggregate wait: the DMA semaphore counts bytes and every row copy has an
    # identical byte count, so a single (tm, D)-shaped descriptor consumes all tm
    # completions (tm must be <= V; the wrapper guarantees this on the fallback path).
    pltpu.make_async_copy(
        table_hbm.at[pl.ds(0, tm), :],
        out_ref,
        copy_sem,
    ).wait()


# --------------------------------------------------------------------------------------
# Wrapper
# --------------------------------------------------------------------------------------
@functools.partial(jax.jit, static_argnames=("tm", "force_hbm_gather"))
def bimamba_embeddings(input_ids, table, *, tm=512, force_hbm_gather=False):
    """Pallas equivalent of BiMambaEmbeddings.forward.

    input_ids: (B, S) integer array
    table:     (vocab_size, d_model) array (nn.Embedding.weight), any float dtype
    returns:   (B, S, d_model) with table.dtype
    """
    B, S = input_ids.shape
    V, D = table.shape
    T = B * S
    dtsize = jnp.dtype(table.dtype).itemsize

    # Token tile: multiple of 8 (sublane), no larger than the padded token count.
    tm = max(8, min(_round_up(tm, 8), _round_up(T, 8)))

    vmem_limit = _vmem_limit_bytes()
    budget = vmem_limit - 4 * _MiB

    # Fast-path VMEM footprint: double-buffered table + double-buffered output tile
    # + one-hot / accumulator scratch + tiny ids tiles.
    v_chunk = min(_round_up(V, 8), 1024)
    fast_bytes = (2 * V * D * dtsize                      # resident table (x2 buffers)
                  + 2 * tm * D * dtsize                   # output double buffer
                  + tm * v_chunk * 4 + tm * D * 4         # one-hot chunk + f32 accumulator
                  + 2 * tm * 4)                           # ids tiles
    use_fast = (not force_hbm_gather) and (fast_bytes <= budget)

    if not use_fast and tm > V:
        # The aggregate-wait descriptor slices tm rows of the table, so keep tm <= V.
        tm = max(8, (V // 8) * 8)

    n_tiles = pl.cdiv(T, tm)
    T_pad = n_tiles * tm

    ids = input_ids.reshape(T).astype(jnp.int32)
    # TODO(synk): nn.Embedding raises on out-of-range ids; here they are clamped instead.
    ids = jnp.clip(ids, 0, V - 1)
    ids = jnp.pad(ids, (0, T_pad - T))  # padded tail rows are masked off at writeback

    # TODO(synk): on v7x, consider pltpu.CORE_PARALLEL on the token axis if "parallel"
    # does not actually shard the grid across both TensorCores.
    cparams = pltpu.CompilerParams(
        dimension_semantics=("parallel",),
        vmem_limit_bytes=int(vmem_limit),
    )

    if use_fast:
        kernel = functools.partial(_vmem_onehot_kernel, v_chunk=v_chunk)
        out = pl.pallas_call(
            kernel,
            out_shape=jax.ShapeDtypeStruct((T, D), table.dtype),
            grid=(n_tiles,),
            in_specs=[
                pl.BlockSpec((tm, 1), lambda i: (i, 0)),   # ids tile
                pl.BlockSpec((V, D), lambda i: (0, 0)),    # full table, VMEM-resident
            ],
            out_specs=pl.BlockSpec((tm, D), lambda i: (i, 0)),
            compiler_params=cparams,
        )(ids.reshape(T_pad, 1), table)
    else:
        out = pl.pallas_call(
            _hbm_row_gather_kernel,
            out_shape=jax.ShapeDtypeStruct((T, D), table.dtype),
            grid_spec=pltpu.PrefetchScalarGridSpec(
                num_scalar_prefetch=1,                      # ids -> SMEM, drive DMA addressing
                grid=(n_tiles,),
                in_specs=[pl.BlockSpec(memory_space=pl.ANY)],   # table stays in HBM
                out_specs=pl.BlockSpec((tm, D), lambda i, ids: (i, 0)),
                scratch_shapes=[pltpu.SemaphoreType.DMA],
            ),
            compiler_params=cparams,
        )(ids, table)

    # Reshape (T, D) -> (B, S, D) is metadata only (no copy); no padded-output slice.
    return out.reshape(B, S, D)


if __name__ == "__main__":
    key = jax.random.PRNGKey(0)
    k1, k2, k3, k4 = jax.random.split(key, 4)

    # 1) Small config consistent with the module: vocab=64, d_model=32, batch=2, seqlen=8.
    V1, D1, B1, S1 = 64, 32, 2, 8
    table1 = jax.random.normal(k1, (V1, D1), dtype=jnp.float32)
    ids1 = jax.random.randint(k2, (B1, S1), 0, V1, dtype=jnp.int32)
    out1 = jax.block_until_ready(bimamba_embeddings(ids1, table1))
    ref1 = jnp.take(table1, ids1, axis=0)
    assert out1.shape == (B1, S1, D1), out1.shape
    assert jnp.array_equal(out1, ref1), "fast path (single tile) mismatch"

    # 2) Multi-tile fast path with a ragged last output block (T=400, tm=128).
    V2, D2, B2, S2 = 1000, 256, 2, 200
    table2 = jax.random.normal(k3, (V2, D2), dtype=jnp.float32)
    ids2 = jax.random.randint(k4, (B2, S2), 0, V2, dtype=jnp.int32)
    out2 = jax.block_until_ready(bimamba_embeddings(ids2, table2, tm=128))
    ref2 = jnp.take(table2, ids2, axis=0)
    assert out2.shape == (B2, S2, D2), out2.shape
    assert jnp.array_equal(out2, ref2), "fast path (multi-tile, ragged tail) mismatch"

    # 3) Large-table fallback path (HBM row gather + aggregate wait), forced here.
    out3 = jax.block_until_ready(
        bimamba_embeddings(ids2, table2, tm=128, force_hbm_gather=True))
    assert jnp.array_equal(out3, ref2), "HBM row-gather fallback mismatch"

    print("KERNEL_OK")
</pallas_src>

<mosaic_0001>
module attributes {stable_mosaic.version = 11 : i64} {
  func.func @_vmem_onehot_kernel(%arg0: i32, %arg1: memref<16x1xi32, #tpu.memory_space<vmem>>, %arg2: memref<64x32xf32, #tpu.memory_space<vmem>>, %arg3: memref<16x32xf32, #tpu.memory_space<vmem>>) attributes {dimension_semantics = [#tpu.dimension_semantics<parallel>], iteration_bounds = array<i64: 1>, scalar_prefetch = 0 : i64, scratch_operands = 0 : i64, tpu.core_type = #tpu.core_type<tc>, window_params = [{transform_indices = @transform_0, window_bounds = array<i64: 16, 1>}, {pipeline_mode = #tpu.pipeline_mode<synchronous>, transform_indices = @transform_1, window_bounds = array<i64: 64, 32>}, {transform_indices = @transform_2, window_bounds = array<i64: 16, 32>}]} {
    %c0 = arith.constant 0 : index
    %c0_0 = arith.constant 0 : index
    %0 = vector.load %arg1[%c0, %c0_0] : memref<16x1xi32, #tpu.memory_space<vmem>>, vector<16x1xi32>
    %1 = tpu.iota {dimensions = array<i32: 1>} : vector<16x64xi32>
    %c0_i32 = arith.constant 0 : i32
    %2 = vector.broadcast %c0_i32 : i32 to vector<16x64xi32>
    %3 = arith.addi %2, %1 : vector<16x64xi32>
    %4 = vector.broadcast %0 : vector<16x1xi32> to vector<16x64xi32>
    %5 = arith.cmpi eq, %4, %3 : vector<16x64xi32>
    %6 = arith.extui %5 : vector<16x64xi1> to vector<16x64xi32>
    %7 = arith.sitofp %6 : vector<16x64xi32> to vector<16x64xf32>
    %c0_1 = arith.constant 0 : index
    %c0_2 = arith.constant 0 : index
    %8 = vector.load %arg2[%c0_1, %c0_2] : memref<64x32xf32, #tpu.memory_space<vmem>>, vector<64x32xf32>
    %cst = arith.constant dense<0.000000e+00> : vector<16x32xf32>
    %9 = tpu.matmul %7, %8, %cst {dimension_numbers = #tpu.dot_dimension_numbers<[1], [0], [0], [1], [0, 0, 1, 1], [], []>} : vector<16x64xf32>, vector<64x32xf32>, vector<16x32xf32> -> vector<16x32xf32>
    %c0_3 = arith.constant 0 : index
    %c0_4 = arith.constant 0 : index
    %10 = vector.load %arg3[%c0_3, %c0_4] : memref<16x32xf32, #tpu.memory_space<vmem>>, vector<16x32xf32>
    tpu.vector_store %arg3[%c0_3, %c0_4], %9 {strides = array<i32>} : memref<16x32xf32, #tpu.memory_space<vmem>>, vector<16x32xf32>,
    return
  }
  func.func @transform_0(%arg0: i32) -> (i32, i32) {
    %c0_i32 = arith.constant 0 : i32
    %c0_i32_0 = arith.constant 0 : i32
    return %arg0, %c0_i32 : i32, i32
  }
  func.func @transform_1(%arg0: i32) -> (i32, i32) {
    %c0_i32 = arith.constant 0 : i32
    %c0_i32_0 = arith.constant 0 : i32
    %c0_i32_1 = arith.constant 0 : i32
    return %c0_i32, %c0_i32_0 : i32, i32
  }
  func.func @transform_2(%arg0: i32) -> (i32, i32) {
    %c0_i32 = arith.constant 0 : i32
    %c0_i32_0 = arith.constant 0 : i32
    return %arg0, %c0_i32 : i32, i32
  }
}

</mosaic_0001>

<llo_original>
// kernel: bimamba_embeddings.1
$region0: #{bimamba_embeddings.1}
  #allocation0 [shape = 'u32[]', space=smem, size = 0x4, offset = 0x4, fixed_abs, tag = 'smem constant byte address 0x4 - core index']
  #allocation1 [shape = 'u32[144,128]{1,0:T(1,128)}', space=vmem, size = 0x12000, scoped, tag = 'internal scratch']
  %s0 = inlined_call_operand.vmem [shape: s32[16,1], index: 0, kind: input, shape index: {}]
  %s1 = inlined_call_operand.vmem [shape: f32[64,32], index: 1, kind: input, shape index: {}]
  %s2 = inlined_call_operand.hbm [shape: f32[16,32], index: 2, kind: output, shape index: {}]
  %s3 = sld [smem:[#allocation0]]
  $region18: #{bimamba_embeddings.1} parent=0
    _
  %s5 = ssub.s32 1, %s3
  %s6 = scalar_select 0, %s5, %s3
  $region1: #{bimamba_embeddings.1} parent=0
    #allocation2 [shape = 'u8[8192]{0}', space=vmem, size = 0x2000, scoped, tag = 'output window, operand 0, single buffered']
    #allocation3 [shape = 's32[1]{0}', space=sflag, size = 0x4, scoped, tag = 'scoped memory for bimamba_embeddings.1']
    %7 = vsyncpa [#allocation3], 0
    // Predicated region
    $region2: #{bimamba_embeddings.1} parent=1 // pred_check
      _
    $region3: #{bimamba_embeddings.1} parent=1 // pred_check_branch
      %9 = sbr.rel (0) target = $region5
    $region4: #{bimamba_embeddings.1} parent=1 // pred_region
      _
    $region5: #{bimamba_embeddings.1} parent=1 // pred_fallthru
      _
    // Predicated region
    $region6: #{bimamba_embeddings.1} parent=1 // pred_check
      _
    $region7: #{bimamba_embeddings.1} parent=1 // pred_check_branch
      %11 = sbr.rel (0) target = $region9
    $region8: #{bimamba_embeddings.1} parent=1 // pred_region
      _
    $region9: #{bimamba_embeddings.1} parent=1 // pred_fallthru
      _
    %v12 = vld [vmem:[%s0] sm:$0xff]
    %v13 = vld [vmem:[%s0 + $0x8] sm:$0xff]
    %v14 = vlaneseq
    %v15 = vand.u32 %v14, 127
    %16 = vset.pattern.permute.xlu0 0
    %17 = vperm.xlu0 %16, %v12
    %v18 = vpop.permute.xlu0 %17
    %19 = vset.pattern.permute.xlu0 0
    %20 = vperm.xlu0 %19, %v13
    %v21 = vpop.permute.xlu0 %20
    %vm22 = vcmp.eq.s32.totalorder %v18, %v15
    %vm23 = vcmp.eq.s32.totalorder %v21, %v15
    %v24 = vsel %vm22, 1, 0
    %v25 = vsel %vm23, 1, 0
    %v26 = vcvt.s32.f32 %v24
    %v27 = vcvt.s32.f32 %v25
    %v28 = vld [vmem:[%s1] sm:$0xff]
    %v29 = vld [vmem:[%s1 + $0x8] sm:$0xff]
    %v30 = vld [vmem:[%s1 + $0x10] sm:$0xff]
    %v31 = vld [vmem:[%s1 + $0x18] sm:$0xff]
    %v32 = vld [vmem:[%s1 + $0x20] sm:$0xff]
    %v33 = vld [vmem:[%s1 + $0x28] sm:$0xff]
    %v34 = vld [vmem:[%s1 + $0x30] sm:$0xff]
    %v35 = vld [vmem:[%s1 + $0x38] sm:$0xff]
    %vm36 = vcmask 523264
    %v38 = vsel %vm36, %v26, 0
    %v41 = vsel %vm36, %v27, 0
    %43 = vmatprep.subr.mxu0 0.0
    %44 = vmatpush1.msra.mxu0 %v28
    %45 = vmatprep.subr.mxu0 0.0
    %46 = vmatpush1.msra.mxu0 %v29
    %47 = vmatprep.subr.mxu0 0.0
    %48 = vmatpush1.msra.mxu0 %v30
    %49 = vmatprep.subr.mxu0 0.0
    %50 = vmatpush1.msra.mxu0 %v31
    %51 = vmatprep.subr.mxu0 0.0
    %52 = vmatpush1.msra.mxu0 %v32
    %53 = vmatprep.subr.mxu0 0.0
    %54 = vmatpush1.msra.mxu0 %v33
    %55 = vmatprep.subr.mxu0 0.0
    %56 = vmatpush1.msra.mxu0 %v34
    %57 = vmatprep.subr.mxu0 0.0
    %58 = vmatpush1.msra.mxu0 %v35
    %59 = vmatprep.subr.mxu0 0.0
    %60 = vmatpush1.msra.mxu0 0.0
    %61 = vmatprep.subr.mxu0 0.0
    %62 = vmatpush1.msra.mxu0 0.0
    %63 = vmatprep.subr.mxu0 0.0
    %64 = vmatpush1.msra.mxu0 0.0
    %65 = vmatprep.subr.mxu0 0.0
    %66 = vmatpush1.msra.mxu0 0.0
    %67 = vmatprep.subr.mxu0 0.0
    %68 = vmatpush1.msra.mxu0 0.0
    %69 = vmatprep.subr.mxu0 0.0
    %70 = vmatpush1.msra.mxu0 0.0
    %71 = vmatprep.subr.mxu0 0.0
    %72 = vmatpush1.msra.mxu0 0.0
    %73 = vmatprep.subr.mxu0 0.0
    %74 = vmatpush1.msra.mxu0 0.0
    %75 = vmatprep.subr.mxu0 0.0
    %76 = vmatpush1.msra.mxu0 0.0
    %77 = vmatprep.subr.mxu0 0.0
    %78 = vmatpush1.msra.mxu0 0.0
    %79 = vmatprep.subr.mxu0 0.0
    %80 = vmatpush1.msra.mxu0 0.0
    %81 = vmatprep.subr.mxu0 0.0
    %82 = vmatpush1.msra.mxu0 0.0
    %83 = vmatprep.subr.mxu0 0.0
    %84 = vmatpush1.msra.mxu0 0.0
    %85 = vmatprep.subr.mxu0 0.0
    %86 = vmatpush1.msra.mxu0 0.0
    %87 = vmatprep.subr.mxu0 0.0
    %88 = vmatpush1.msra.mxu0 0.0
    %89 = vmatprep.subr.mxu0 0.0
    %90 = vmatpush1.msra.mxu0 0.0
    %91 = vmatprep.subr.mxu0 0.0
    %92 = vmatpush1.msra.mxu0 0.0
    %93 = vmatprep.subr.mxu0 0.0
    %94 = vmatpush1.msra.mxu0 0.0
    %95 = vmatprep.subr.mxu0 0.0
    %96 = vmatpush1.msra.mxu0 0.0
    %97 = vmatprep.subr.mxu0 0.0
    %98 = vmatpush1.msra.mxu0 0.0
    %99 = vmatprep.subr.mxu0 0.0
    %100 = vmatpush1.msra.mxu0 0.0
    %101 = vmatprep.subr.mxu0 0.0
    %102 = vmatpush1.msra.mxu0 0.0
    %103 = vmatprep.subr.mxu0 0.0
    %104 = vmatpush1.msra.mxu0 0.0
    %105 = vmatprep.subr.mxu0 0.0
    %106 = vmatpush1.msra.mxu0 0.0
    %107 = vmatprep.mubr.f32.mxu0 0.0
    %108 = vmatmul.mubr.f32.gmra.mrb[0].mxu0 %v38
    %v109 = vpop.f32.mrb[0].mxu0
    %v110 = vadd.f32 0.0, %v109
    %v111 = vpop.f32.mrb[0].mxu0
    %112 = vmatprep.mubr.f32.mxu0 0.0
    %113 = vmatmul.mubr.f32.gmra.mrb[0].mxu0 %v41
    %v114 = vpop.f32.mrb[0].mxu0
    %v115 = vadd.f32 0.0, %v114
    %v116 = vpop.f32.mrb[0].mxu0
    %117 = vdwg.mxu0
    %vm118 = vcmask 261120
    %119 = vst.msk [vmem:[#allocation2] sm:$0xff] %vm118, %v110
    %120 = vst.msk [vmem:[#allocation2 + $0x8] sm:$0xff] %vm118, %v115
    // Predicated region
    $region10: #{bimamba_embeddings.1} parent=1 // pred_check
      _
    $region11: #{bimamba_embeddings.1} parent=1 // pred_check_branch
      %122 = sbr.rel (0) target = $region13
    $region12: #{bimamba_embeddings.1} parent=1 // pred_region
      %s124 = ssub.s32 256, 256
      %125 = vsyncadd [#allocation3], %s124
      %s126 = sshll.u32 [#allocation2], 4
      %s127 = int_to_ptr.vmem [resolvable:$true] %s126
      %132 = dma.vmem_to_hbm [thread:$0]  %s127, 256, %s2, [#allocation3], 128, 128, 8
    $region13: #{bimamba_embeddings.1} parent=1 // pred_fallthru
      _
    // Predicated region
    $region14: #{bimamba_embeddings.1} parent=1 // pred_check
      _
    $region15: #{bimamba_embeddings.1} parent=1 // pred_check_branch
      %134 = sbr.rel (0) target = $region17
    $region16: #{bimamba_embeddings.1} parent=1 // pred_region
      %135 = dma.done [#allocation3], 256
    $region17: #{bimamba_embeddings.1} parent=1 // pred_fallthru
      _
    %136 = vsyncpa [#allocation3], 1

</llo_original>
